<compile_context>
chip_gen: v6e
topology: v6e:2x2x1
jax: 0.10.0
libtpu: 0.0.40
codegen_flags: <defaults>
</compile_context>

<pallas_src>
import functools

import jax
import jax.numpy as jnp
from jax.experimental import pallas as pl
from jax.experimental.pallas import tpu as pltpu

ALPHA = 0.25
GAMMA = 2.0

_LANES = 128
_SUBLANES = 8
_CHUNK_ROWS = 512                            # in-kernel strip-mine granularity (rows)
_BLOCK_BYTES_PER_STREAM = 4 * 1024 * 1024    # ~4 MiB per input stream per buffer


def _cdiv(a, b):
    return (a + b - 1) // b


def _round_down(a, b):
    return (a // b) * b


def _num_parallel_cores():
    """Best-effort TensorCores-per-device count (size of the leading 'parallel' axis)."""
    try:
        kind = jax.devices()[0].device_kind.lower()
    except Exception:
        return 1
    # Single-TensorCore-per-device generations: keep the outer axis trivial.
    for s in ("v2", "v3", "v5 lite", "v5e", "v6 lite", "v6e", "trillium"):
        if s in kind:
            return 1
    # Dual-TensorCore-per-device generations (v4 / v5p megacore, v7x).
    for s in ("v4", "v5p", "v7"):
        if s in kind:
            return 2
    return 1


def _focal_elementwise(x, t, alpha, gamma):
    """focal = alpha * (1 - exp(-bce))**gamma * bce, numerically-stable bce (f32 math)."""
    x = x.astype(jnp.float32)
    t = t.astype(jnp.float32)
    # torch's stable BCE-with-logits: max(x,0) - x*t + log1p(exp(-|x|))
    e = jnp.exp(-jnp.abs(x))
    bce = jnp.maximum(x, 0.0) - x * t + jnp.log1p(e)
    pt = jnp.exp(-bce)
    omp = 1.0 - pt
    if gamma == 2.0:
        mod = omp * omp                       # keep pow off the EUP
    elif gamma == float(int(gamma)) and gamma >= 0.0:
        mod = jnp.ones_like(omp)
        for _ in range(int(gamma)):
            mod = mod * omp
    else:
        mod = omp ** gamma
    return alpha * mod * bce


def _focal_sum_jnp(x, t, alpha, gamma):
    if x.size == 0:
        return jnp.float32(0.0)
    return jnp.sum(_focal_elementwise(x, t, alpha, gamma))


def _focal_loss_kernel(x_ref, t_ref, o_ref, *, alpha, gamma, chunk_rows,
                       num_chunks, total_blocks, valid_rows_last):
    c = pl.program_id(0)
    s = pl.program_id(1)
    n_steps = pl.num_programs(1)
    linear = c * n_steps + s
    block_rows = chunk_rows * num_chunks

    # Zero this core's resident lane-dense partial-sum block once.
    @pl.when(s == 0)
    def _():
        o_ref[...] = jnp.zeros_like(o_ref)

    def accumulate(valid_rows):
        # valid_rows: None -> every row of the block is valid (unmasked fast path);
        #             int  -> only the first `valid_rows` rows are valid (final block).
        def chunk_body(ci, carry):
            r0 = pl.multiple_of(ci * chunk_rows, chunk_rows)
            x = x_ref[pl.ds(r0, chunk_rows), :]
            t = t_ref[pl.ds(r0, chunk_rows), :]
            focal = _focal_elementwise(x, t, alpha, gamma)
            if valid_rows is not None:
                row = jax.lax.broadcasted_iota(jnp.int32, focal.shape, 0) + r0
                focal = jnp.where(row < valid_rows, focal, 0.0)
            # Lane-dense VPU accumulation into the resident (8,128) output block; the
            # single cross-lane/sublane reduction happens once in the wrapper.
            o_ref[...] += focal.reshape(
                chunk_rows // _SUBLANES, _SUBLANES, _LANES).sum(axis=0)
            return carry

        jax.lax.fori_loop(0, num_chunks, chunk_body, 0)

    last_block = total_blocks - 1
    if valid_rows_last == block_rows:
        # Rows divide the blocks exactly: no masking anywhere.
        @pl.when(linear < total_blocks)
        def _():
            accumulate(None)
    else:
        @pl.when(linear < last_block)
        def _():
            accumulate(None)

        @pl.when(linear == last_block)
        def _():
            accumulate(valid_rows_last)


def focal_loss(inputs, targets, alpha=ALPHA, gamma=GAMMA):
    """Pallas TPU implementation of FocalLoss.forward (returns a scalar, f32)."""
    assert inputs.shape == targets.shape
    n = int(inputs.size)
    if n == 0:
        # torch .mean() over an empty tensor is NaN.
        return jnp.float32(jnp.nan)

    alpha = float(alpha)
    gamma = float(gamma)

    x = jnp.ravel(inputs)      # native dtype; kernel upcasts on the VPU
    t = jnp.ravel(targets)

    # Ragged tail (< 128 elements): handled with plain jnp on a tiny suffix slice instead
    # of concatenating / re-materializing the whole array in HBM.
    n_main = _round_down(n, _LANES)
    tail_sum = None
    if n_main < n:
        tail_sum = _focal_sum_jnp(x[n_main:], t[n_main:], alpha, gamma)
        if n_main == 0:
            return tail_sum / jnp.float32(n)
        # TODO(synk): this prefix slice re-materializes the bulk; only hit when n % 128 != 0.
        x = x[:n_main]
        t = t[:n_main]

    rows = n_main // _LANES

    # Dtype-aware tiling granularity: 8 sublanes for 32-bit, 16 for bf16, 32 for 8-bit.
    min_itemsize = min(jnp.dtype(x.dtype).itemsize, jnp.dtype(t.dtype).itemsize)
    max_itemsize = max(jnp.dtype(x.dtype).itemsize, jnp.dtype(t.dtype).itemsize)
    granularity = _SUBLANES * max(1, 4 // max(1, min_itemsize))

    if rows < granularity:
        # Too small for a well-formed TPU tile: plain jnp is already optimal here.
        total = _focal_sum_jnp(x, t, alpha, gamma)
        if tail_sum is not None:
            total = total + tail_sum
        return total / jnp.float32(n)

    x2 = x.reshape(rows, _LANES)   # zero-copy reshape of the flat array
    t2 = t.reshape(rows, _LANES)

    # Block size: ~4 MiB per stream per buffer (2 streams x 2 buffers = 16 MiB VMEM),
    # strip-mined in-kernel so intermediates never exceed a (chunk_rows, 128) slab.
    max_block_rows = _round_down(_BLOCK_BYTES_PER_STREAM // (_LANES * max_itemsize),
                                 _CHUNK_ROWS)
    if rows >= max_block_rows:
        block_rows, chunk_rows = max_block_rows, _CHUNK_ROWS
    elif rows >= _CHUNK_ROWS:
        block_rows, chunk_rows = _round_down(rows, _CHUNK_ROWS), _CHUNK_ROWS
    else:
        block_rows = _round_down(rows, granularity)
        chunk_rows = block_rows
    num_chunks = block_rows // chunk_rows

    total_blocks = _cdiv(rows, block_rows)
    valid_rows_last = rows - (total_blocks - 1) * block_rows   # Python int, no overflow

    num_parallel = max(1, min(_num_parallel_cores(), total_blocks))
    steps = _cdiv(total_blocks, num_parallel)

    def in_map(c, s):
        # Clamp so out-of-range grid points (skipped in-kernel) never index past the array.
        return (jnp.minimum(c * steps + s, total_blocks - 1), 0)

    in_spec = pl.BlockSpec((block_rows, _LANES), in_map)

    partials = pl.pallas_call(
        functools.partial(
            _focal_loss_kernel,
            alpha=alpha, gamma=gamma, chunk_rows=chunk_rows, num_chunks=num_chunks,
            total_blocks=total_blocks, valid_rows_last=valid_rows_last),
        out_shape=jax.ShapeDtypeStruct((num_parallel * _SUBLANES, _LANES), jnp.float32),
        grid_spec=pltpu.PrefetchScalarGridSpec(
            num_scalar_prefetch=0,
            grid=(num_parallel, steps),
            in_specs=[in_spec, in_spec],
            out_specs=pl.BlockSpec((_SUBLANES, _LANES), lambda c, s: (c, 0)),
        ),
        compiler_params=pltpu.CompilerParams(
            dimension_semantics=("parallel", "arbitrary"),
            vmem_limit_bytes=32 * 1024 * 1024,
        ),
    )(x2, t2)

    total = jnp.sum(partials)
    if tail_sum is not None:
        total = total + tail_sum
    return total / jnp.float32(n)


def _reference_focal_loss(inputs, targets, alpha=ALPHA, gamma=GAMMA):
    x = inputs.astype(jnp.float32)
    t = targets.astype(jnp.float32)
    bce = jnp.maximum(x, 0.0) - x * t + jnp.log1p(jnp.exp(-jnp.abs(x)))
    pt = jnp.exp(-bce)
    return jnp.mean(alpha * (1.0 - pt) ** gamma * bce)


if __name__ == "__main__":
    key = jax.random.PRNGKey(0)
    k1, k2, k3, k4 = jax.random.split(key, 4)

    # Primary test: small NCHW logits and soft targets in [0, 1].
    inputs = jax.random.normal(k1, (2, 4, 16, 16), dtype=jnp.float32)
    targets = jax.random.uniform(k2, (2, 4, 16, 16), dtype=jnp.float32)
    out = jax.block_until_ready(focal_loss(inputs, targets))
    ref = jax.block_until_ready(_reference_focal_loss(inputs, targets))
    assert jnp.allclose(out, ref, rtol=1e-5, atol=1e-6), (out, ref)

    # Secondary test: ragged size exercising the tail and masked-last-block paths.
    inputs2 = jax.random.normal(k3, (3, 5, 17, 19), dtype=jnp.float32)
    targets2 = jax.random.uniform(k4, (3, 5, 17, 19), dtype=jnp.float32)
    out2 = jax.block_until_ready(focal_loss(inputs2, targets2))
    ref2 = jax.block_until_ready(_reference_focal_loss(inputs2, targets2))
    assert jnp.allclose(out2, ref2, rtol=1e-5, atol=1e-6), (out2, ref2)

    print("KERNEL_OK")
</pallas_src>

<mosaic_0001>
module attributes {stable_mosaic.version = 11 : i64} {
  func.func @_focal_loss_kernel(%arg0: i32, %arg1: i32, %arg2: memref<16x128xf32, #tpu.memory_space<vmem>>, %arg3: memref<16x128xf32, #tpu.memory_space<vmem>>, %arg4: memref<8x128xf32, #tpu.memory_space<vmem>>) attributes {dimension_semantics = [#tpu.dimension_semantics<parallel>, #tpu.dimension_semantics<arbitrary>], iteration_bounds = array<i64: 1, 1>, scalar_prefetch = 0 : i64, scratch_operands = 0 : i64, tpu.core_type = #tpu.core_type<tc>, window_params = [{transform_indices = @transform_0, window_bounds = array<i64: 16, 128>}, {transform_indices = @transform_1, window_bounds = array<i64: 16, 128>}, {transform_indices = @transform_2, window_bounds = array<i64: 8, 128>}]} {
    %c1_i32 = arith.constant 1 : i32
    %0 = arith.muli %arg0, %c1_i32 : i32
    %1 = arith.addi %0, %arg1 : i32
    %c0_i32 = arith.constant 0 : i32
    %2 = arith.cmpi eq, %arg1, %c0_i32 : i32
    %3 = arith.extui %2 : i1 to i32
    %c0_i32_0 = arith.constant 0 : i32
    %4 = arith.cmpi ne, %3, %c0_i32_0 : i32
    scf.if %4 {
      %cst = arith.constant 0.000000e+00 : f32
      %8 = vector.broadcast %cst : f32 to vector<8x128xf32>
      %c0 = arith.constant 0 : index
      %c0_3 = arith.constant 0 : index
      %9 = vector.load %arg4[%c0, %c0_3] : memref<8x128xf32, #tpu.memory_space<vmem>>, vector<8x128xf32>
      tpu.vector_store %arg4[%c0, %c0_3], %8 {strides = array<i32>} : memref<8x128xf32, #tpu.memory_space<vmem>>, vector<8x128xf32>,
    } else {
    }
    %c1_i32_1 = arith.constant 1 : i32
    %5 = arith.cmpi slt, %1, %c1_i32_1 : i32
    %6 = arith.extui %5 : i1 to i32
    %c0_i32_2 = arith.constant 0 : i32
    %7 = arith.cmpi ne, %6, %c0_i32_2 : i32
    scf.if %7 {
      %c0_i32_3 = arith.constant 0 : i32
      %c16_i32 = arith.constant 16 : i32
      %8 = arith.muli %c0_i32_3, %c16_i32 : i32
      %9 = tpu.assume_multiple %8, 16 : i32
      %10 = arith.index_cast %9 : i32 to index
      %c0 = arith.constant 0 : index
      %11 = vector.load %arg2[%10, %c0] : memref<16x128xf32, #tpu.memory_space<vmem>>, vector<16x128xf32>
      %12 = arith.index_cast %9 : i32 to index
      %c0_4 = arith.constant 0 : index
      %13 = vector.load %arg3[%12, %c0_4] : memref<16x128xf32, #tpu.memory_space<vmem>>, vector<16x128xf32>
      %14 = math.absf %11 : vector<16x128xf32>
      %cst = arith.constant 0.000000e+00 : f32
      %15 = vector.broadcast %cst : f32 to vector<16x128xf32>
      %16 = arith.subf %15, %14 : vector<16x128xf32>
      %17 = math.exp %16 : vector<16x128xf32>
      %cst_5 = arith.constant 0.000000e+00 : f32
      %18 = vector.broadcast %cst_5 : f32 to vector<16x128xf32>
      %19 = arith.maximumf %11, %18 : vector<16x128xf32>
      %20 = arith.mulf %11, %13 : vector<16x128xf32>
      %21 = arith.subf %19, %20 : vector<16x128xf32>
      %22 = math.log1p %17 : vector<16x128xf32>
      %23 = arith.addf %21, %22 : vector<16x128xf32>
      %cst_6 = arith.constant 0.000000e+00 : f32
      %24 = vector.broadcast %cst_6 : f32 to vector<16x128xf32>
      %25 = arith.subf %24, %23 : vector<16x128xf32>
      %26 = math.exp %25 : vector<16x128xf32>
      %cst_7 = arith.constant 1.000000e+00 : f32
      %27 = vector.broadcast %cst_7 : f32 to vector<16x128xf32>
      %28 = arith.subf %27, %26 : vector<16x128xf32>
      %29 = arith.mulf %28, %28 : vector<16x128xf32>
      %cst_8 = arith.constant 2.500000e-01 : f32
      %30 = vector.broadcast %cst_8 : f32 to vector<16x128xf32>
      %31 = arith.mulf %30, %29 : vector<16x128xf32>
      %32 = arith.mulf %31, %23 : vector<16x128xf32>
      %c0_9 = arith.constant 0 : index
      %c0_10 = arith.constant 0 : index
      %33 = vector.load %arg4[%c0_9, %c0_10] : memref<8x128xf32, #tpu.memory_space<vmem>>, vector<8x128xf32>
      %34 = vector.shape_cast %32 : vector<16x128xf32> to vector<2x8x128xf32>
      %cst_11 = arith.constant dense<0.000000e+00> : vector<8x128xf32>
      %35 = vector.multi_reduction <add>, %34, %cst_11 [0] : vector<2x8x128xf32> to vector<8x128xf32>
      %36 = arith.addf %33, %35 : vector<8x128xf32>
      %c0_12 = arith.constant 0 : index
      %c0_13 = arith.constant 0 : index
      %37 = vector.load %arg4[%c0_12, %c0_13] : memref<8x128xf32, #tpu.memory_space<vmem>>, vector<8x128xf32>
      tpu.vector_store %arg4[%c0_12, %c0_13], %36 {strides = array<i32>} : memref<8x128xf32, #tpu.memory_space<vmem>>, vector<8x128xf32>,
      %c1_i32_14 = arith.constant 1 : i32
    } else {
    }
    return
  }
  func.func @transform_0(%arg0: i32, %arg1: i32) -> (i32, i32) {
    %c1_i32 = arith.constant 1 : i32
    %0 = arith.muli %arg0, %c1_i32 : i32
    %1 = arith.addi %0, %arg1 : i32
    %c0_i32 = arith.constant 0 : i32
    %2 = arith.minsi %1, %c0_i32 : i32
    %c0_i32_0 = arith.constant 0 : i32
    %c0_i32_1 = arith.constant 0 : i32
    return %2, %c0_i32_0 : i32, i32
  }
  func.func @transform_1(%arg0: i32, %arg1: i32) -> (i32, i32) {
    %c1_i32 = arith.constant 1 : i32
    %0 = arith.muli %arg0, %c1_i32 : i32
    %1 = arith.addi %0, %arg1 : i32
    %c0_i32 = arith.constant 0 : i32
    %2 = arith.minsi %1, %c0_i32 : i32
    %c0_i32_0 = arith.constant 0 : i32
    %c0_i32_1 = arith.constant 0 : i32
    return %2, %c0_i32_0 : i32, i32
  }
  func.func @transform_2(%arg0: i32, %arg1: i32) -> (i32, i32) {
    %c0_i32 = arith.constant 0 : i32
    %c0_i32_0 = arith.constant 0 : i32
    return %arg0, %c0_i32 : i32, i32
  }
}

</mosaic_0001>

<llo_original>
// kernel: tpu_custom_call.1
$region0: #{tpu_custom_call.1}
  #allocation0 [shape = 'u32[]', space=smem, size = 0x4, offset = 0x4, fixed_abs, tag = 'smem constant byte address 0x4 - core index']
  #allocation1 [shape = 'u32[144,128]{1,0:T(1,128)}', space=vmem, size = 0x12000, scoped, tag = 'internal scratch']
  %s0 = inlined_call_operand.hbm [shape: f32[16,128], index: 0, kind: input, shape index: {}]
  %s1 = inlined_call_operand.hbm [shape: f32[16,128], index: 1, kind: input, shape index: {}]
  %s2 = inlined_call_operand.hbm [shape: f32[8,128], index: 2, kind: output, shape index: {}]
  %s3 = sld [smem:[#allocation0]]
  $region34: #{tpu_custom_call.1} parent=0
    _
  %s5 = ssub.s32 1, %s3
  %s6 = scalar_select 0, %s5, %s3
  $region1: #{tpu_custom_call.1} parent=0
    #allocation2 [shape = 'u8[8192]{0}', space=vmem, size = 0x2000, scoped, tag = 'input window, operand 0, single buffered']
    #allocation3 [shape = 's32[1]{0}', space=sflag, size = 0x4, scoped, tag = 'scoped memory for tpu_custom_call.1']
    #allocation4 [shape = 's32[1]{0}', space=sflag, size = 0x4, scoped, tag = 'scoped memory for tpu_custom_call.1']
    #allocation5 [shape = 'u8[8192]{0}', space=vmem, size = 0x2000, scoped, tag = 'input window, operand 1, single buffered']
    #allocation6 [shape = 's32[1]{0}', space=sflag, size = 0x4, scoped, tag = 'scoped memory for tpu_custom_call.1']
    #allocation7 [shape = 'u8[4096]{0}', space=vmem, size = 0x1000, scoped, tag = 'output window, operand 0, single buffered']
    %7 = vsyncpa [#allocation3], 0
    %8 = vsyncpa [#allocation6], 0
    %9 = vsyncpa [#allocation4], 0
    // Predicated region
    $region2: #{tpu_custom_call.1} parent=1 // pred_check
      _
    $region3: #{tpu_custom_call.1} parent=1 // pred_check_branch
      %11 = sbr.rel (0) target = $region5
    $region4: #{tpu_custom_call.1} parent=1 // pred_region
      %s12 = sadd.s32 0, 0
      %p13 = scmp.lt.s32.totalorder %s12, 0
      %s14 = scalar_select %p13, %s12, 0
      %s15 = smul.u32 2, %s14
      %s17 = ssub.s32 256, 256
      %18 = vsyncadd [#allocation3], %s17
      %s19 = smul.addr %s15, 128
      %s20 = scalar_lea.hbm %s0, %s19
      %s21 = sshll.u32 [#allocation2], 4
      %s22 = int_to_ptr.vmem [resolvable:$true] %s21
      %27 = dma.hbm_to_vmem [thread:$0]  %s20, 256, %s22, [#allocation3], 128, 128, 8
    $region5: #{tpu_custom_call.1} parent=1 // pred_fallthru
      _
    // Predicated region
    $region6: #{tpu_custom_call.1} parent=1 // pred_check
      _
    $region7: #{tpu_custom_call.1} parent=1 // pred_check_branch
      %29 = sbr.rel (0) target = $region9
    $region8: #{tpu_custom_call.1} parent=1 // pred_region
      %s30 = sadd.s32 0, 0
      %p31 = scmp.lt.s32.totalorder %s30, 0
      %s32 = scalar_select %p31, %s30, 0
      %s33 = smul.u32 2, %s32
      %s35 = ssub.s32 256, 256
      %36 = vsyncadd [#allocation6], %s35
      %s37 = smul.addr %s33, 128
      %s38 = scalar_lea.hbm %s1, %s37
      %s39 = sshll.u32 [#allocation5], 4
      %s40 = int_to_ptr.vmem [resolvable:$true] %s39
      %45 = dma.hbm_to_vmem [thread:$0]  %s38, 256, %s40, [#allocation6], 128, 128, 8
    $region9: #{tpu_custom_call.1} parent=1 // pred_fallthru
      _
    // Predicated region
    $region10: #{tpu_custom_call.1} parent=1 // pred_check
      _
    $region11: #{tpu_custom_call.1} parent=1 // pred_check_branch
      %47 = sbr.rel (0) target = $region13
    $region12: #{tpu_custom_call.1} parent=1 // pred_region
      %48 = dma.done [#allocation3], 256
    $region13: #{tpu_custom_call.1} parent=1 // pred_fallthru
      _
    // Predicated region
    $region14: #{tpu_custom_call.1} parent=1 // pred_check
      _
    $region15: #{tpu_custom_call.1} parent=1 // pred_check_branch
      %50 = sbr.rel (0) target = $region17
    $region16: #{tpu_custom_call.1} parent=1 // pred_region
      %51 = dma.done [#allocation6], 256
    $region17: #{tpu_custom_call.1} parent=1 // pred_fallthru
      _
    %s52 = sadd.s32 0, 0
    %p53 = scmp.lt.s32.totalorder %s52, 0
    %s54 = scalar_select %p53, %s52, 0
    %s55 = smul.u32 2, %s54
    %s56 = sadd.s32 0, 0
    %p57 = scmp.lt.s32.totalorder %s56, 0
    %s58 = scalar_select %p57, %s56, 0
    %s59 = smul.u32 2, %s58
    %s60 = sadd.s32 0, 0
    %p61 = scmp.eq.s32.totalorder 0, 0
    // Predicated region
    $region18: #{tpu_custom_call.1} parent=1 // pred_check
      %p62 = pneg %p61
    $region19: #{tpu_custom_call.1} parent=1 // pred_check_branch
      %64 = sbr.rel (%p62) target = $region21
    $region20: #{tpu_custom_call.1} parent=1 // pred_region
      %65 = vst [vmem:[#allocation7] sm:$0xff] 0.0
    $region21: #{tpu_custom_call.1} parent=1 // pred_fallthru
      _
    %p66 = scmp.lt.s32.totalorder %s60, 1
    // Predicated region
    $region22: #{tpu_custom_call.1} parent=1 // pred_check
      %p67 = pneg %p66
    $region23: #{tpu_custom_call.1} parent=1 // pred_check_branch
      %69 = sbr.rel (%p67) target = $region25
    $region24: #{tpu_custom_call.1} parent=1 // pred_region
      %v70 = vld [vmem:[#allocation2] sm:$0xff]
      %v71 = vld [vmem:[#allocation2 + $0x8] sm:$0xff]
      %v72 = vld [vmem:[#allocation5] sm:$0xff]
      %v73 = vld [vmem:[#allocation5 + $0x8] sm:$0xff]
      %v74 = vand.u32 2147483647, %v70
      %v75 = vand.u32 2147483647, %v71
      %v76 = vsub.f32 0.0, %v74
      %v77 = vsub.f32 0.0, %v75
      %v78 = vmul.f32 %v76, 1.442695
      %v79 = vpow.pop %v78
      %v80 = vmul.f32 %v77, 1.442695
      %v81 = vpow.pop %v80
      %v82 = vmax.f32 %v70, 0.0
      %v83 = vmax.f32 %v71, 0.0
      %v84 = vmul.f32 %v70, %v72
      %v85 = vmul.f32 %v71, %v73
      %v86 = vsub.f32 %v82, %v84
      %v87 = vsub.f32 %v83, %v85
      %v88 = vadd.f32 %v79, 1.0
      %v89 = vlog2.pop %v88
      %v90 = vmul.f32 %v89, 0.6931472
      %v91 = vmul.f32 -0.5, %v79
      %v92 = vadd.f32 %v91, 1.0
      %v93 = vmul.f32 %v92, %v79
      %v94 = vand.u32 2147483647, %v79
      %vm95 = vcmp.lt.f32.partialorder %v94, 0.0004427343
      %v96 = vsel %vm95, %v93, %v90
      %v97 = vadd.f32 %v81, 1.0
      %v98 = vlog2.pop %v97
      %v99 = vmul.f32 %v98, 0.6931472
      %v100 = vmul.f32 -0.5, %v81
      %v101 = vadd.f32 %v100, 1.0
      %v102 = vmul.f32 %v101, %v81
      %v103 = vand.u32 2147483647, %v81
      %vm104 = vcmp.lt.f32.partialorder %v103, 0.0004427343
      %v105 = vsel %vm104, %v102, %v99
      %v106 = vadd.f32 %v86, %v96
      %v107 = vadd.f32 %v87, %v105
      %v108 = vsub.f32 0.0, %v106
      %v109 = vsub.f32 0.0, %v107
      %v110 = vmul.f32 %v108, 1.442695
      %v111 = vpow.pop %v110
      %v112 = vmul.f32 %v109, 1.442695
      %v113 = vpow.pop %v112
      %v114 = vsub.f32 1.0, %v111
      %v115 = vsub.f32 1.0, %v113
      %v116 = vmul.f32 %v114, %v114
      %v117 = vmul.f32 %v115, %v115
      %v118 = vmul.f32 %v116, 0.25
      %v119 = vmul.f32 %v117, 0.25
      %v120 = vmul.f32 %v118, %v106
      %v121 = vmul.f32 %v119, %v107
      %v122 = vld [vmem:[#allocation7] sm:$0xff]
      %v123 = vadd.f32 %v120, %v121
      %v124 = vadd.f32 %v122, %v123
      %125 = vst [vmem:[#allocation7] sm:$0xff] %v124
    $region25: #{tpu_custom_call.1} parent=1 // pred_fallthru
      _
    // Predicated region
    $region26: #{tpu_custom_call.1} parent=1 // pred_check
      _
    $region27: #{tpu_custom_call.1} parent=1 // pred_check_branch
      %127 = sbr.rel (0) target = $region29
    $region28: #{tpu_custom_call.1} parent=1 // pred_region
      %s129 = ssub.s32 128, 128
      %130 = vsyncadd [#allocation4], %s129
      %s132 = sshll.u32 [#allocation7], 4
      %s133 = int_to_ptr.vmem [resolvable:$true] %s132
      %135 = dma.vmem_to_hbm [thread:$0]  %s133, 128, %s2, [#allocation4]
    $region29: #{tpu_custom_call.1} parent=1 // pred_fallthru
      _
    // Predicated region
    $region30: #{tpu_custom_call.1} parent=1 // pred_check
      _
    $region31: #{tpu_custom_call.1} parent=1 // pred_check_branch
      %137 = sbr.rel (0) target = $region33
    $region32: #{tpu_custom_call.1} parent=1 // pred_region
      %138 = dma.done [#allocation4], 128
    $region33: #{tpu_custom_call.1} parent=1 // pred_fallthru
      _
    %139 = vsyncpa [#allocation3], 1
    %140 = vsyncpa [#allocation6], 1
    %141 = vsyncpa [#allocation4], 1

</llo_original>
